<compile_context>
chip_gen: v7x
topology: tpu7x:2x2x1
jax: 0.10.0
libtpu: 0.0.40
codegen_flags: <defaults>
</compile_context>

<pallas_src>
import numpy as np
import jax
import jax.numpy as jnp
from jax.experimental import pallas as pl
from jax.experimental.pallas import tpu as pltpu


_NEG = -1.0e30  # finite "minus infinity" for padding (exp underflows cleanly to 0)


def _round_up(x, m):
    return ((x + m - 1) // m) * m


def _cdiv(a, b):
    return -(-a // b)


def _make_kernel(tile_cols):
    """Online-logsumexp cross-entropy kernel over (cluster, row-tile, class-tile)."""

    def kernel(rt_ref, ct_ref, logits_ref, tgt_ref, out_ref,
               m_sc, l_sc, g_sc, acc_sc):
        # rt_ref/ct_ref: SMEM (K,) int32 -- #valid row tiles / #valid class tiles
        # logits_ref: (tile_rows, tile_cols) current tile (leading cluster dim squeezed)
        # tgt_ref:    (tile_rows, 1) int32 remapped targets, -1 marks padded rows
        # out_ref:    (8, 128) per-cluster partial-loss block (written once per cluster)
        # m_sc/l_sc/g_sc: (tile_rows, 1) f32 running max / rescaled exp-sum / target logit
        # acc_sc:     (1, 1) f32 per-cluster loss accumulator
        k = pl.program_id(0)
        t = pl.program_id(1)
        c = pl.program_id(2)
        T = pl.num_programs(1)
        C = pl.num_programs(2)

        row_valid = t < rt_ref[k]
        live = row_valid & (c < ct_ref[k])

        # new cluster -> zero its loss accumulator
        @pl.when((t == 0) & (c == 0))
        def _():
            acc_sc[...] = jnp.zeros_like(acc_sc)

        # new (cluster, row-tile) -> reset the online-softmax state
        @pl.when((c == 0) & row_valid)
        def _():
            m_sc[...] = jnp.full_like(m_sc, _NEG)
            l_sc[...] = jnp.zeros_like(l_sc)
            g_sc[...] = jnp.zeros_like(g_sc)

        # fold this class tile into the running logsumexp (skipped for padding tiles)
        @pl.when(live)
        def _():
            x = logits_ref[...].astype(jnp.float32)            # (TR, TC)
            tgt = tgt_ref[...]                                  # (TR, 1) int32

            m_prev = m_sc[...]
            m_new = jnp.maximum(m_prev, jnp.max(x, axis=-1, keepdims=True))
            e = jnp.exp(x - m_new)
            l_sc[...] = l_sc[...] * jnp.exp(m_prev - m_new) + \
                jnp.sum(e, axis=-1, keepdims=True)
            m_sc[...] = m_new

            # gather target logit if it lives in this class tile (global column iota)
            col = jax.lax.broadcasted_iota(jnp.int32, x.shape, 1) + c * tile_cols
            g_sc[...] += jnp.sum(jnp.where(col == tgt, x, 0.0),
                                 axis=-1, keepdims=True)

        # after the last (static) class tile: finalize this row tile into the
        # cluster accumulator (dead class tiles never touched the scratch)
        @pl.when((c == C - 1) & row_valid)
        def _():
            tgt = tgt_ref[...]
            lse = m_sc[...] + jnp.log(l_sc[...])
            diff = jnp.where(tgt >= 0, lse - g_sc[...], 0.0)    # (TR, 1)
            acc_sc[...] += jnp.sum(diff, axis=0, keepdims=True)

        # last static step of this cluster: publish the per-cluster partial once
        @pl.when((t == T - 1) & (c == C - 1))
        def _():
            out_ref[...] = jnp.zeros_like(out_ref) + acc_sc[...]

    return kernel


def fused_adaptive_ce_partials(logits_pad, tgt_pad, row_tiles, col_tiles, *,
                               tile_rows, tile_cols, vmem_limit_bytes,
                               cost_estimate):
    """Per-cluster sum-reduced cross entropy, one pallas_call over all clusters."""
    K, N_cap, C_pad = logits_pad.shape
    assert N_cap % tile_rows == 0 and C_pad % tile_cols == 0
    T_grid = N_cap // tile_rows
    C_grid = C_pad // tile_cols

    # Clamped index maps: once past a cluster's valid row/class tiles, keep
    # returning the previously used block index so no new DMA is issued.
    def logits_map(k, t, c, rt, ct):
        t_eff = jnp.minimum(t, rt[k] - 1)
        c_eff = jnp.where(t < rt[k], jnp.minimum(c, ct[k] - 1), ct[k] - 1)
        return (k, t_eff, c_eff)

    def tgt_map(k, t, c, rt, ct):
        return (k, jnp.minimum(t, rt[k] - 1), 0)

    def out_map(k, t, c, rt, ct):
        return (k, 0, 0)

    grid_spec = pltpu.PrefetchScalarGridSpec(
        num_scalar_prefetch=2,
        grid=(K, T_grid, C_grid),
        in_specs=[
            pl.BlockSpec((None, tile_rows, tile_cols), logits_map),
            pl.BlockSpec((None, tile_rows, 1), tgt_map),
        ],
        out_specs=pl.BlockSpec((None, 8, 128), out_map),
        scratch_shapes=[
            pltpu.VMEM((tile_rows, 1), jnp.float32),   # running max
            pltpu.VMEM((tile_rows, 1), jnp.float32),   # running exp-sum
            pltpu.VMEM((tile_rows, 1), jnp.float32),   # target logit
            pltpu.VMEM((1, 1), jnp.float32),           # per-cluster loss acc
        ],
    )

    out = pl.pallas_call(
        _make_kernel(tile_cols),
        out_shape=jax.ShapeDtypeStruct((K, 8, 128), jnp.float32),
        grid_spec=grid_spec,
        compiler_params=pltpu.CompilerParams(
            # cluster axis parallel -> both v7x TensorCores; reductions stay arbitrary
            dimension_semantics=("parallel", "arbitrary", "arbitrary"),
            vmem_limit_bytes=vmem_limit_bytes,
        ),
        cost_estimate=cost_estimate,
    )(row_tiles, col_tiles, logits_pad, tgt_pad)
    return out[:, 0, 0]                                  # (K,) per-cluster partial sums


class AdaptiveLoss:
    """JAX/Pallas port of the PyTorch AdaptiveLoss module (forward semantics)."""

    def __init__(self, cutoff, tile_rows=None, tile_cols=None):
        self.cutoff = cutoff
        self.tile_rows = tile_rows   # optional overrides (mainly for tests)
        self.tile_cols = tile_cols

    def remap_target(self, target):
        # Host-side (numpy): shapes are data-dependent, mirroring the PyTorch
        # boolean-mask indexing.  Force a writable copy (jax arrays export
        # read-only numpy views).
        target = np.array(target, copy=True)
        new_target = [target.copy()]
        for i in range(len(self.cutoff) - 1):
            mask = (target >= self.cutoff[i]) & (target < self.cutoff[i + 1])
            new_target[0][mask] = self.cutoff[0] + i
            if mask.any():
                new_target.append(target[mask] - self.cutoff[i])
            else:
                new_target.append(None)
        return new_target

    def forward(self, inputs, target):
        batch_size = inputs[0].shape[0]
        targets = self.remap_target(target)

        # Gather active (logits, remapped-target) pairs on the host, keeping the
        # original size-mismatch truncation semantics.
        pairs = []
        for i in range(len(inputs)):
            if inputs[i] is None or targets[i] is None:
                continue
            inp = np.asarray(inputs[i])
            tgt = np.asarray(targets[i])
            if tgt.shape[0] > inp.shape[0]:
                tgt = tgt[: inp.shape[0]]
            elif tgt.shape[0] < inp.shape[0]:
                inp = inp[: tgt.shape[0], :]
            if inp.shape[0] == 0 or inp.shape[1] == 0:
                continue
            # strict upper bound: a target == C would silently corrupt the loss
            assert tgt.min() >= 0 and tgt.max() < inp.shape[1]
            pairs.append((inp, tgt))

        if not pairs:
            return jnp.float32(0.0)

        # --- tile sizing (generation-aware) ---------------------------------
        buf_dtype = np.dtype(pairs[0][0].dtype)
        if buf_dtype not in (np.dtype(np.float32), np.dtype(jnp.bfloat16),
                             np.dtype(np.float16)):
            buf_dtype = np.dtype(np.float32)
        itemsize = buf_dtype.itemsize

        n_max = max(int(p[0].shape[0]) for p in pairs)
        c_max = max(int(p[0].shape[1]) for p in pairs)

        tile_cols = self.tile_cols or min(512, _round_up(c_max, 128))
        tile_cols = max(128, _round_up(tile_cols, 128))
        C_pad = _round_up(c_max, tile_cols)

        try:
            vmem_cap = int(pltpu.get_tpu_info().vmem_capacity_bytes)
        except Exception:
            vmem_cap = 64 << 20   # conservative (v7x per-core VMEM)

        # Budget: 2x double-buffered input blocks + ~in-kernel f32 temporaries.
        per_elem = 2 * itemsize + 24
        budget = max(vmem_cap // 3, 8 << 20)
        cap_rows = max(8, (budget // (tile_cols * per_elem)) // 8 * 8)
        tile_rows = self.tile_rows or min(_round_up(n_max, 8), cap_rows, 1024)
        tile_rows = max(8, _round_up(int(tile_rows), 8))

        N_cap = _round_up(n_max, tile_rows)

        # --- host-side (numpy) padded buffers, single H2D transfer ----------
        K = len(pairs)
        logits_np = np.full((K, N_cap, C_pad), _NEG, dtype=buf_dtype)
        tgt_np = np.full((K, N_cap, 1), -1, dtype=np.int32)
        rt_np = np.zeros((K,), np.int32)   # valid row tiles per cluster
        ct_np = np.zeros((K,), np.int32)   # valid class tiles per cluster
        for i, (inp, tgt) in enumerate(pairs):
            n_i, c_i = int(inp.shape[0]), int(inp.shape[1])
            logits_np[i, :n_i, :c_i] = inp.astype(buf_dtype, copy=False)
            tgt_np[i, :n_i, 0] = tgt.astype(np.int32, copy=False)
            rt_np[i] = _cdiv(n_i, tile_rows)
            ct_np[i] = _cdiv(c_i, tile_cols)

        # vmem limit: double-buffered input block + f32 temporaries + scratch + slack
        est = (tile_rows * tile_cols * (2 * itemsize + 16)
               + 8 * tile_rows * 128 * 4 + (6 << 20))
        vmem_limit = int(min(max(est, 16 << 20), max(vmem_cap * 3 // 4, 16 << 20)))

        useful = int(sum(int(rt_np[i]) * int(ct_np[i]) for i in range(K))) \
            * tile_rows * tile_cols
        cost = pl.CostEstimate(
            flops=int(6 * useful),
            transcendentals=int(useful),
            bytes_accessed=int(useful * itemsize
                               + int(rt_np.sum()) * tile_rows * 4
                               + K * 8 * 128 * 4),
        )

        partials = fused_adaptive_ce_partials(
            jnp.asarray(logits_np), jnp.asarray(tgt_np),
            jnp.asarray(rt_np), jnp.asarray(ct_np),
            tile_rows=tile_rows, tile_cols=tile_cols,
            vmem_limit_bytes=vmem_limit, cost_estimate=cost)

        return jnp.sum(partials) / jnp.float32(batch_size)


def _ref_ce_sum(logits, targets):
    ls = jax.nn.log_softmax(jnp.asarray(logits, jnp.float32), axis=-1)
    return -jnp.sum(ls[jnp.arange(logits.shape[0]), jnp.asarray(targets, jnp.int32)])


if __name__ == "__main__":
    # Small synthetic setup consistent with AdaptiveSoftmax output shapes:
    #   cutoff = [8, 200, 456] -> head has cutoff[0] + len(cutoff) - 1 = 10 classes,
    #   tail clusters have 192 and 256 classes respectively.  These sizes exercise
    #   multi class-tile streaming plus the row-tile / class-tile skip paths.
    cutoff = [8, 200, 456]
    N = 20
    head_classes = cutoff[0] + len(cutoff) - 1

    key = jax.random.PRNGKey(0)
    k_t, k_h, k_t1, k_t2 = jax.random.split(key, 4)

    target_np = np.array(
        jax.random.randint(k_t, (N,), 0, cutoff[-1], dtype=jnp.int32)
    ).astype(np.int64).copy()
    # deterministically guarantee every bucket is non-empty
    target_np[0] = 3                 # head bucket
    target_np[1] = 100               # tail cluster 1
    target_np[2] = 300               # tail cluster 2

    n1 = int(np.sum((target_np >= cutoff[0]) & (target_np < cutoff[1])))
    n2 = int(np.sum((target_np >= cutoff[1]) & (target_np < cutoff[2])))

    head_logits = jax.random.normal(k_h, (N, head_classes), jnp.float32)
    tail1_logits = jax.random.normal(k_t1, (n1, cutoff[1] - cutoff[0]), jnp.float32)
    tail2_logits = jax.random.normal(k_t2, (n2, cutoff[2] - cutoff[1]), jnp.float32)
    inputs = [head_logits, tail1_logits, tail2_logits]

    # pure-JAX reference
    criterion = AdaptiveLoss(cutoff)
    remapped = criterion.remap_target(target_np)
    ref = 0.0
    for i in range(len(inputs)):
        if inputs[i] is not None and remapped[i] is not None:
            ref = ref + _ref_ce_sum(inputs[i], remapped[i])
    ref = np.asarray(ref / N)

    # 1) forced small tiles: exercises online logsumexp across class tiles and
    #    the clamped-index-map skip of padded row/class tiles.
    loss_small = jax.block_until_ready(
        AdaptiveLoss(cutoff, tile_rows=8, tile_cols=128).forward(inputs, target_np))
    np.testing.assert_allclose(np.asarray(loss_small), ref, rtol=1e-4, atol=1e-4)

    # 2) auto-tiled (production path)
    loss_auto = jax.block_until_ready(criterion.forward(inputs, target_np))
    np.testing.assert_allclose(np.asarray(loss_auto), ref, rtol=1e-4, atol=1e-4)

    print("KERNEL_OK")
</pallas_src>

<mosaic_0001>
module attributes {stable_mosaic.version = 11 : i64} {
  func.func @kernel(%arg0: i32, %arg1: i32, %arg2: i32, %arg3: memref<3xi32, #tpu.memory_space<smem>>, %arg4: memref<3xi32, #tpu.memory_space<smem>>, %arg5: memref<1x8x128xf32, #tpu.memory_space<vmem>>, %arg6: memref<1x8x1xi32, #tpu.memory_space<vmem>>, %arg7: memref<1x8x128xf32, #tpu.memory_space<vmem>>, %arg8: memref<8x1xf32, #tpu.memory_space<vmem>>, %arg9: memref<8x1xf32, #tpu.memory_space<vmem>>, %arg10: memref<8x1xf32, #tpu.memory_space<vmem>>, %arg11: memref<1x1xf32, #tpu.memory_space<vmem>>) attributes {dimension_semantics = [#tpu.dimension_semantics<parallel>, #tpu.dimension_semantics<arbitrary>, #tpu.dimension_semantics<arbitrary>], iteration_bounds = array<i64: 3, 3, 2>, scalar_prefetch = 2 : i64, scratch_operands = 4 : i64, tpu.core_type = #tpu.core_type<tc>, window_params = [{transform_indices = @transform_0, window_bounds = array<i64: 1, 8, 128>}, {transform_indices = @transform_1, window_bounds = array<i64: 1, 8, 1>}, {transform_indices = @transform_2, window_bounds = array<i64: 1, 8, 128>}]} {
    %0 = arith.index_cast %arg0 : i32 to index
    %1 = memref.load %arg3[%0] : memref<3xi32, #tpu.memory_space<smem>>
    %2 = arith.cmpi slt, %arg1, %1 : i32
    %3 = arith.index_cast %arg0 : i32 to index
    %4 = memref.load %arg4[%3] : memref<3xi32, #tpu.memory_space<smem>>
    %5 = arith.cmpi slt, %arg2, %4 : i32
    %6 = arith.andi %2, %5 : i1
    %c0_i32 = arith.constant 0 : i32
    %7 = arith.cmpi eq, %arg1, %c0_i32 : i32
    %c0_i32_0 = arith.constant 0 : i32
    %8 = arith.cmpi eq, %arg2, %c0_i32_0 : i32
    %9 = arith.andi %7, %8 : i1
    %10 = arith.extui %9 : i1 to i32
    %c0_i32_1 = arith.constant 0 : i32
    %11 = arith.cmpi ne, %10, %c0_i32_1 : i32
    scf.if %11 {
      %cst = arith.constant 0.000000e+00 : f32
      %27 = vector.broadcast %cst : f32 to vector<1x1xf32>
      %c0 = arith.constant 0 : index
      %c0_8 = arith.constant 0 : index
      %28 = vector.load %arg11[%c0, %c0_8] : memref<1x1xf32, #tpu.memory_space<vmem>>, vector<1x1xf32>
      tpu.vector_store %arg11[%c0, %c0_8], %27 {strides = array<i32>} : memref<1x1xf32, #tpu.memory_space<vmem>>, vector<1x1xf32>,
    } else {
    }
    %c0_i32_2 = arith.constant 0 : i32
    %12 = arith.cmpi eq, %arg2, %c0_i32_2 : i32
    %13 = arith.andi %12, %2 : i1
    %14 = arith.extui %13 : i1 to i32
    %c0_i32_3 = arith.constant 0 : i32
    %15 = arith.cmpi ne, %14, %c0_i32_3 : i32
    scf.if %15 {
      %cst = arith.constant -1.000000e+30 : f32
      %27 = vector.broadcast %cst : f32 to vector<8x1xf32>
      %c0 = arith.constant 0 : index
      %c0_8 = arith.constant 0 : index
      %28 = vector.load %arg8[%c0, %c0_8] : memref<8x1xf32, #tpu.memory_space<vmem>>, vector<8x1xf32>
      tpu.vector_store %arg8[%c0, %c0_8], %27 {strides = array<i32>} : memref<8x1xf32, #tpu.memory_space<vmem>>, vector<8x1xf32>,
      %cst_9 = arith.constant 0.000000e+00 : f32
      %29 = vector.broadcast %cst_9 : f32 to vector<8x1xf32>
      %c0_10 = arith.constant 0 : index
      %c0_11 = arith.constant 0 : index
      %30 = vector.load %arg9[%c0_10, %c0_11] : memref<8x1xf32, #tpu.memory_space<vmem>>, vector<8x1xf32>
      tpu.vector_store %arg9[%c0_10, %c0_11], %29 {strides = array<i32>} : memref<8x1xf32, #tpu.memory_space<vmem>>, vector<8x1xf32>,
      %cst_12 = arith.constant 0.000000e+00 : f32
      %31 = vector.broadcast %cst_12 : f32 to vector<8x1xf32>
      %c0_13 = arith.constant 0 : index
      %c0_14 = arith.constant 0 : index
      %32 = vector.load %arg10[%c0_13, %c0_14] : memref<8x1xf32, #tpu.memory_space<vmem>>, vector<8x1xf32>
      tpu.vector_store %arg10[%c0_13, %c0_14], %31 {strides = array<i32>} : memref<8x1xf32, #tpu.memory_space<vmem>>, vector<8x1xf32>,
    } else {
    }
    %16 = arith.extui %6 : i1 to i32
    %c0_i32_4 = arith.constant 0 : i32
    %17 = arith.cmpi ne, %16, %c0_i32_4 : i32
    scf.if %17 {
      %c0 = arith.constant 0 : index
      %c0_8 = arith.constant 0 : index
      %c0_9 = arith.constant 0 : index
      %27 = vector.load %arg5[%c0, %c0_8, %c0_9] : memref<1x8x128xf32, #tpu.memory_space<vmem>>, vector<1x8x128xf32>
      %28 = vector.shape_cast %27 : vector<1x8x128xf32> to vector<8x128xf32>
      %c0_10 = arith.constant 0 : index
      %c0_11 = arith.constant 0 : index
      %c0_12 = arith.constant 0 : index
      %29 = vector.load %arg6[%c0_10, %c0_11, %c0_12] : memref<1x8x1xi32, #tpu.memory_space<vmem>>, vector<1x8x1xi32>
      %30 = vector.shape_cast %29 : vector<1x8x1xi32> to vector<8x1xi32>
      %c0_13 = arith.constant 0 : index
      %c0_14 = arith.constant 0 : index
      %31 = vector.load %arg8[%c0_13, %c0_14] : memref<8x1xf32, #tpu.memory_space<vmem>>, vector<8x1xf32>
      %cst = arith.constant dense<0xFF800000> : vector<8xf32>
      %32 = vector.multi_reduction <maximumf>, %28, %cst [1] : vector<8x128xf32> to vector<8xf32>
      %33 = vector.shape_cast %32 : vector<8xf32> to vector<8x1xf32>
      %34 = arith.maximumf %31, %33 : vector<8x1xf32>
      %35 = vector.broadcast %34 : vector<8x1xf32> to vector<8x128xf32>
      %36 = arith.subf %28, %35 : vector<8x128xf32>
      %37 = math.exp %36 : vector<8x128xf32>
      %c0_15 = arith.constant 0 : index
      %c0_16 = arith.constant 0 : index
      %38 = vector.load %arg9[%c0_15, %c0_16] : memref<8x1xf32, #tpu.memory_space<vmem>>, vector<8x1xf32>
      %39 = arith.subf %31, %34 : vector<8x1xf32>
      %40 = math.exp %39 : vector<8x1xf32>
      %41 = arith.mulf %38, %40 : vector<8x1xf32>
      %cst_17 = arith.constant dense<0.000000e+00> : vector<8xf32>
      %42 = vector.multi_reduction <add>, %37, %cst_17 [1] : vector<8x128xf32> to vector<8xf32>
      %43 = vector.shape_cast %42 : vector<8xf32> to vector<8x1xf32>
      %44 = arith.addf %41, %43 : vector<8x1xf32>
      %c0_18 = arith.constant 0 : index
      %c0_19 = arith.constant 0 : index
      %45 = vector.load %arg9[%c0_18, %c0_19] : memref<8x1xf32, #tpu.memory_space<vmem>>, vector<8x1xf32>
      tpu.vector_store %arg9[%c0_18, %c0_19], %44 {strides = array<i32>} : memref<8x1xf32, #tpu.memory_space<vmem>>, vector<8x1xf32>,
      %c0_20 = arith.constant 0 : index
      %c0_21 = arith.constant 0 : index
      %46 = vector.load %arg8[%c0_20, %c0_21] : memref<8x1xf32, #tpu.memory_space<vmem>>, vector<8x1xf32>
      tpu.vector_store %arg8[%c0_20, %c0_21], %34 {strides = array<i32>} : memref<8x1xf32, #tpu.memory_space<vmem>>, vector<8x1xf32>,
      %47 = tpu.iota {dimensions = array<i32: 1>} : vector<8x128xi32>
      %c128_i32 = arith.constant 128 : i32
      %48 = arith.muli %arg2, %c128_i32 : i32
      %49 = vector.broadcast %48 : i32 to vector<8x128xi32>
      %50 = arith.addi %47, %49 : vector<8x128xi32>
      %c0_22 = arith.constant 0 : index
      %c0_23 = arith.constant 0 : index
      %51 = vector.load %arg10[%c0_22, %c0_23] : memref<8x1xf32, #tpu.memory_space<vmem>>, vector<8x1xf32>
      %52 = vector.broadcast %30 : vector<8x1xi32> to vector<8x128xi32>
      %53 = arith.cmpi eq, %50, %52 : vector<8x128xi32>
      %cst_24 = arith.constant 0.000000e+00 : f32
      %54 = vector.broadcast %cst_24 : f32 to vector<8x128xf32>
      %55 = arith.select %53, %28, %54 : vector<8x128xi1>, vector<8x128xf32>
      %cst_25 = arith.constant dense<0.000000e+00> : vector<8xf32>
      %56 = vector.multi_reduction <add>, %55, %cst_25 [1] : vector<8x128xf32> to vector<8xf32>
      %57 = vector.shape_cast %56 : vector<8xf32> to vector<8x1xf32>
      %58 = arith.addf %51, %57 : vector<8x1xf32>
      %c0_26 = arith.constant 0 : index
      %c0_27 = arith.constant 0 : index
      %59 = vector.load %arg10[%c0_26, %c0_27] : memref<8x1xf32, #tpu.memory_space<vmem>>, vector<8x1xf32>
      tpu.vector_store %arg10[%c0_26, %c0_27], %58 {strides = array<i32>} : memref<8x1xf32, #tpu.memory_space<vmem>>, vector<8x1xf32>,
    } else {
    }
    %c1_i32 = arith.constant 1 : i32
    %18 = arith.cmpi eq, %arg2, %c1_i32 : i32
    %19 = arith.andi %18, %2 : i1
    %20 = arith.extui %19 : i1 to i32
    %c0_i32_5 = arith.constant 0 : i32
    %21 = arith.cmpi ne, %20, %c0_i32_5 : i32
    scf.if %21 {
      %c0 = arith.constant 0 : index
      %c0_8 = arith.constant 0 : index
      %c0_9 = arith.constant 0 : index
      %27 = vector.load %arg6[%c0, %c0_8, %c0_9] : memref<1x8x1xi32, #tpu.memory_space<vmem>>, vector<1x8x1xi32>
      %28 = vector.shape_cast %27 : vector<1x8x1xi32> to vector<8x1xi32>
      %c0_10 = arith.constant 0 : index
      %c0_11 = arith.constant 0 : index
      %29 = vector.load %arg8[%c0_10, %c0_11] : memref<8x1xf32, #tpu.memory_space<vmem>>, vector<8x1xf32>
      %c0_12 = arith.constant 0 : index
      %c0_13 = arith.constant 0 : index
      %30 = vector.load %arg9[%c0_12, %c0_13] : memref<8x1xf32, #tpu.memory_space<vmem>>, vector<8x1xf32>
      %31 = math.log %30 : vector<8x1xf32>
      %32 = arith.addf %29, %31 : vector<8x1xf32>
      %c0_i32_14 = arith.constant 0 : i32
      %33 = vector.broadcast %c0_i32_14 : i32 to vector<8x1xi32>
      %34 = arith.cmpi sge, %28, %33 : vector<8x1xi32>
      %c0_15 = arith.constant 0 : index
      %c0_16 = arith.constant 0 : index
      %35 = vector.load %arg10[%c0_15, %c0_16] : memref<8x1xf32, #tpu.memory_space<vmem>>, vector<8x1xf32>
      %36 = arith.subf %32, %35 : vector<8x1xf32>
      %cst = arith.constant 0.000000e+00 : f32
      %37 = vector.broadcast %cst : f32 to vector<8x1xf32>
      %38 = arith.select %34, %36, %37 : vector<8x1xi1>, vector<8x1xf32>
      %c0_17 = arith.constant 0 : index
      %c0_18 = arith.constant 0 : index
      %39 = vector.load %arg11[%c0_17, %c0_18] : memref<1x1xf32, #tpu.memory_space<vmem>>, vector<1x1xf32>
      %cst_19 = arith.constant dense<0.000000e+00> : vector<1xf32>
      %40 = vector.multi_reduction <add>, %38, %cst_19 [0] : vector<8x1xf32> to vector<1xf32>
      %41 = vector.shape_cast %40 : vector<1xf32> to vector<1x1xf32>
      %42 = arith.addf %39, %41 : vector<1x1xf32>
      %c0_20 = arith.constant 0 : index
      %c0_21 = arith.constant 0 : index
      %43 = vector.load %arg11[%c0_20, %c0_21] : memref<1x1xf32, #tpu.memory_space<vmem>>, vector<1x1xf32>
      tpu.vector_store %arg11[%c0_20, %c0_21], %42 {strides = array<i32>} : memref<1x1xf32, #tpu.memory_space<vmem>>, vector<1x1xf32>,
    } else {
    }
    %c2_i32 = arith.constant 2 : i32
    %22 = arith.cmpi eq, %arg1, %c2_i32 : i32
    %c1_i32_6 = arith.constant 1 : i32
    %23 = arith.cmpi eq, %arg2, %c1_i32_6 : i32
    %24 = arith.andi %22, %23 : i1
    %25 = arith.extui %24 : i1 to i32
    %c0_i32_7 = arith.constant 0 : i32
    %26 = arith.cmpi ne, %25, %c0_i32_7 : i32
    scf.if %26 {
      %cst = arith.constant 0.000000e+00 : f32
      %27 = vector.broadcast %cst : f32 to vector<8x128xf32>
      %c0 = arith.constant 0 : index
      %c0_8 = arith.constant 0 : index
      %28 = vector.load %arg11[%c0, %c0_8] : memref<1x1xf32, #tpu.memory_space<vmem>>, vector<1x1xf32>
      %29 = vector.broadcast %28 : vector<1x1xf32> to vector<8x128xf32>
      %30 = arith.addf %27, %29 : vector<8x128xf32>
      %c0_9 = arith.constant 0 : index
      %c0_10 = arith.constant 0 : index
      %c0_11 = arith.constant 0 : index
      %31 = vector.load %arg7[%c0_9, %c0_10, %c0_11] : memref<1x8x128xf32, #tpu.memory_space<vmem>>, vector<1x8x128xf32>
      %32 = vector.shape_cast %31 : vector<1x8x128xf32> to vector<8x128xf32>
      %33 = vector.shape_cast %30 : vector<8x128xf32> to vector<1x8x128xf32>
      tpu.vector_store %arg7[%c0_9, %c0_10, %c0_11], %33 {strides = array<i32>} : memref<1x8x128xf32, #tpu.memory_space<vmem>>, vector<1x8x128xf32>,
    } else {
    }
    return
  }
  func.func @transform_0(%arg0: i32, %arg1: i32, %arg2: i32, %arg3: memref<3xi32, #tpu.memory_space<smem>>, %arg4: memref<3xi32, #tpu.memory_space<smem>>) -> (i32, i32, i32) {
    %0 = arith.index_cast %arg0 : i32 to index
    %1 = memref.load %arg3[%0] : memref<3xi32, #tpu.memory_space<smem>>
    %c1_i32 = arith.constant 1 : i32
    %2 = arith.subi %1, %c1_i32 : i32
    %3 = arith.minsi %arg1, %2 : i32
    %4 = arith.index_cast %arg0 : i32 to index
    %5 = memref.load %arg3[%4] : memref<3xi32, #tpu.memory_space<smem>>
    %6 = arith.cmpi slt, %arg1, %5 : i32
    %7 = arith.index_cast %arg0 : i32 to index
    %8 = memref.load %arg4[%7] : memref<3xi32, #tpu.memory_space<smem>>
    %c1_i32_0 = arith.constant 1 : i32
    %9 = arith.subi %8, %c1_i32_0 : i32
    %10 = arith.minsi %arg2, %9 : i32
    %11 = arith.index_cast %arg0 : i32 to index
    %12 = memref.load %arg4[%11] : memref<3xi32, #tpu.memory_space<smem>>
    %c1_i32_1 = arith.constant 1 : i32
    %13 = arith.subi %12, %c1_i32_1 : i32
    %14 = arith.select %6, %10, %13 : i32
    %c0_i32 = arith.constant 0 : i32
    return %arg0, %3, %14 : i32, i32, i32
  }
  func.func @transform_1(%arg0: i32, %arg1: i32, %arg2: i32, %arg3: memref<3xi32, #tpu.memory_space<smem>>, %arg4: memref<3xi32, #tpu.memory_space<smem>>) -> (i32, i32, i32) {
    %0 = arith.index_cast %arg0 : i32 to index
    %1 = memref.load %arg3[%0] : memref<3xi32, #tpu.memory_space<smem>>
    %c1_i32 = arith.constant 1 : i32
    %2 = arith.subi %1, %c1_i32 : i32
    %3 = arith.minsi %arg1, %2 : i32
    %c0_i32 = arith.constant 0 : i32
    %c0_i32_0 = arith.constant 0 : i32
    return %arg0, %3, %c0_i32 : i32, i32, i32
  }
  func.func @transform_2(%arg0: i32, %arg1: i32, %arg2: i32, %arg3: memref<3xi32, #tpu.memory_space<smem>>, %arg4: memref<3xi32, #tpu.memory_space<smem>>) -> (i32, i32, i32) {
    %c0_i32 = arith.constant 0 : i32
    %c0_i32_0 = arith.constant 0 : i32
    %c0_i32_1 = arith.constant 0 : i32
    return %arg0, %c0_i32, %c0_i32_0 : i32, i32, i32
  }
}

</mosaic_0001>

<llo_original>
// kernel: tpu_custom_call.1
$region0: #{tpu_custom_call.1}
  #allocation0 [shape = 'u32[]', space=smem, size = 0x4, offset = 0x4, fixed_abs, tag = 'smem constant byte address 0x4 - core index']
  #allocation1 [shape = 'u32[144,128]{1,0:T(1,128)}', space=vmem, size = 0x12000, scoped, tag = 'internal scratch']
  #allocation2 [shape = 'f32[8,1]{1,0:T(8,128)}', space=vmem, size = 0x1000, scoped, tag = 'scratch operand']
  #allocation3 [shape = 'f32[8,1]{1,0:T(8,128)}', space=vmem, size = 0x1000, scoped, tag = 'scratch operand']
  #allocation4 [shape = 'f32[8,1]{1,0:T(8,128)}', space=vmem, size = 0x1000, scoped, tag = 'scratch operand']
  #allocation5 [shape = 'f32[1,1]{1,0:T(1,128)}', space=vmem, size = 0x200, scoped, tag = 'scratch operand']
  #allocation6 [shape = 's32[1]{0}', space=sflag, size = 0x4, scoped, tag = 'scoped memory for tpu_custom_call.1']
  #allocation7 [shape = 'u8[512]{0}', space=smem, size = 0x200, scoped, tag = 'prefetched SMEM operand 0']
  #allocation8 [shape = 'u8[512]{0}', space=smem, size = 0x200, scoped, tag = 'prefetched SMEM operand 1']
  %s0 = inlined_call_operand.vmem [shape: s32[3], index: 0, kind: input, shape index: {}]
  %s1 = inlined_call_operand.vmem [shape: s32[3], index: 1, kind: input, shape index: {}]
  %s2 = inlined_call_operand.hbm [shape: f32[3,24,256], index: 2, kind: input, shape index: {}]
  %s3 = inlined_call_operand.vmem [shape: s32[3,24,1], index: 3, kind: input, shape index: {}]
  %s4 = inlined_call_operand.hbm [shape: f32[3,8,128], index: 4, kind: output, shape index: {}]
  %s5 = sld [smem:[#allocation0]]
  $region65: #{tpu_custom_call.1} parent=0
    _
  %s7 = ssub.s32 1, %s5
  %s8 = scalar_select 0, %s7, %s5
  %s9 = sshll.u32 %s0, 4
  %s10 = int_to_ptr.vmem [resolvable:$true] %s9
  %12 = dma.vmem_to_smem %s10, 16, [#allocation7], [#allocation6]
  %s13 = sshll.u32 %s1, 4
  %s14 = int_to_ptr.vmem [resolvable:$true] %s13
  %16 = dma.vmem_to_smem %s14, 16, [#allocation8], [#allocation6]
  %17 = dma.done [#allocation6], 32
  %18 = sfence
  $region1: #{tpu_custom_call.1} parent=0
    #allocation9 [shape = 'u8[8192]{0}', space=vmem, size = 0x2000, scoped, tag = 'input window, operand 2']
    #allocation10 [shape = 's32[2]{0}', space=sflag, size = 0x8, scoped, tag = 'scoped memory for tpu_custom_call.1']
    #allocation11 [shape = 's32[2]{0}', space=sflag, size = 0x8, scoped, tag = 'scoped memory for tpu_custom_call.1']
    #allocation12 [shape = 'u8[8192]{0}', space=vmem, size = 0x2000, scoped, tag = 'output window, operand 0']
    %19 = vsyncpa [#allocation10], 0
    %s20 = scalar_lea.sflag [#allocation10], 1
    %21 = vsyncpa %s20, 0
    %22 = vsyncpa [#allocation11], 0
    %s23 = scalar_lea.sflag [#allocation11], 1
    %24 = vsyncpa %s23, 0
    loop: start=0, step=1, limit=20
    $region2: #{tpu_custom_call.1} parent=1 // loop_pre_header
      _
    $region3: #{tpu_custom_call.1} parent=1 // loop_header
      %s26 = sphi 0, %s30
      %p27 = scmp.ge.s32.totalorder %s26, 20
      %s33 = sphi 0, %s52
      %s34 = sphi 0, %s48
      %s35 = sphi 0, %s44
      %s36 = sphi 0, %s33
      %s37 = sphi 0, %s34
      %s38 = sphi 0, %s35
      %s39 = sphi 0, %s36
      %s40 = sphi 0, %s37
      %s41 = sphi 0, %s38
      %s79 = sphi 0, %s81
      %s82 = sphi 0, %s79
      %s83 = sphi 0, %s82
      %s99 = sphi 0, %s83
      %s115 = sphi 0, %s117
      %s118 = sphi 0, %s115
      %s119 = sphi 0, %s118
      %s135 = sphi 0, %s119
      %s141 = sphi 0, %s143
      %s144 = sphi 0, %s141
      %s145 = sphi 0, %s144
      %s161 = sphi 0, %s145
    $region4: #{tpu_custom_call.1} parent=1 // loop_header_branch
      %29 = sbr.rel (%p27) target = $region8
    $region5: #{tpu_custom_call.1} parent=1 // loop_body
      %s31 = ssub.s32 %s26, 1
      %s32 = ssub.s32 %s26, 2
      %s42 = sadd.s32 1, %s35
      %p43 = scmp.ge.s32.totalorder %s42, 2
      %s44 = scalar_select %p43, 0, %s42
      %s45 = sadd.s32 1, %s34
      %s46 = scalar_select %p43, %s45, %s34
      %p47 = scmp.ge.s32.totalorder %s46, 3
      %s48 = scalar_select %p47, 0, %s46
      %s49 = sadd.s32 1, %s33
      %s50 = scalar_select %p47, %s49, %s33
      %p51 = scmp.ge.s32.totalorder %s50, 3
      %s52 = scalar_select %p51, 0, %s50
      %s53 = sld [smem:[#allocation7 + %s33]]
      %s54 = ssub.s32 %s53, 1
      %p55 = scmp.lt.s32.totalorder %s34, %s54
      %s56 = scalar_select %p55, %s34, %s54
      %p57 = scmp.lt.s32.totalorder %s34, %s53
      %s58 = sld [smem:[#allocation8 + %s33]]
      %s59 = ssub.s32 %s58, 1
      %p60 = scmp.lt.s32.totalorder %s35, %s59
      %s61 = scalar_select %p60, %s35, %s59
      %s62 = scalar_select %p57, %s61, %s59
      %s63 = sld [smem:[#allocation7 + %s52]]
      %s64 = ssub.s32 %s63, 1
      %p65 = scmp.lt.s32.totalorder %s48, %s64
      %s66 = scalar_select %p65, %s48, %s64
      %p67 = scmp.lt.s32.totalorder %s48, %s63
      %s68 = sld [smem:[#allocation8 + %s52]]
      %s69 = ssub.s32 %s68, 1
      %p70 = scmp.lt.s32.totalorder %s44, %s69
      %s71 = scalar_select %p70, %s44, %s69
      %s72 = scalar_select %p67, %s71, %s69
      %s73 = ssub.s32 %s33, %s52
      %s74 = ssub.s32 %s56, %s66
      %s75 = sor.u32 %s73, %s74
      %s76 = ssub.s32 %s62, %s72
      %s77 = sor.u32 %s75, %s76
      %p78 = scmp.eq.s32.totalorder %s77, 0
      %s80 = sadd.s32 %s79, 1
      %s81 = scalar_select %p78, %s79, %s80
      %p84 = pneg %p78
      %p85 = scmp.eq.s32.totalorder %s26, 17
      %p86 = por %p84, %p85
      %p87 = scmp.ne.s32.totalorder %s79, %s82
      %p88 = scmp.eq.s32.totalorder %s26, 0
      %p89 = por %p87, %p88
      %p90 = scmp.ne.s32.totalorder %s79, %s82
      %p91 = scmp.eq.s32.totalorder %s31, 17
      %p92 = por %p90, %p91
      %p93 = scmp.ne.s32.totalorder %s82, %s83
      %p94 = scmp.eq.s32.totalorder %s31, 0
      %p95 = por %p93, %p94
      %p96 = scmp.ne.s32.totalorder %s82, %s83
      %p97 = scmp.eq.s32.totalorder %s32, 17
      %p98 = por %p96, %p97
      %p100 = scmp.ne.s32.totalorder %s83, %s99
      %p101 = scmp.eq.s32.totalorder %s32, 0
      %p102 = por %p100, %p101
      %s103 = sld [smem:[#allocation7 + %s33]]
      %s104 = ssub.s32 %s103, 1
      %p105 = scmp.lt.s32.totalorder %s34, %s104
      %s106 = scalar_select %p105, %s34, %s104
      %s107 = sld [smem:[#allocation7 + %s52]]
      %s108 = ssub.s32 %s107, 1
      %p109 = scmp.lt.s32.totalorder %s48, %s108
      %s110 = scalar_select %p109, %s48, %s108
      %s111 = ssub.s32 %s33, %s52
      %s112 = ssub.s32 %s106, %s110
      %s113 = sor.u32 %s111, %s112
      %p114 = scmp.eq.s32.totalorder %s113, 0
      %s116 = sadd.s32 %s115, 1
      %s117 = scalar_select %p114, %s115, %s116
      %p120 = pneg %p114
      %p121 = scmp.eq.s32.totalorder %s26, 17
      %p122 = por %p120, %p121
      %p123 = scmp.ne.s32.totalorder %s115, %s118
      %p124 = scmp.eq.s32.totalorder %s26, 0
      %p125 = por %p123, %p124
      %p126 = scmp.ne.s32.totalorder %s115, %s118
      %p127 = scmp.eq.s32.totalorder %s31, 17
      %p128 = por %p126, %p127
      %p129 = scmp.ne.s32.totalorder %s118, %s119
      %p130 = scmp.eq.s32.totalorder %s31, 0
      %p131 = por %p129, %p130
      %p132 = scmp.ne.s32.totalorder %s118, %s119
      %p133 = scmp.eq.s32.totalorder %s32, 17
      %p134 = por %p132, %p133
      %p136 = scmp.ne.s32.totalorder %s119, %s135
      %p137 = scmp.eq.s32.totalorder %s32, 0
      %p138 = por %p136, %p137
      %s139 = ssub.s32 %s33, %s52
      %p140 = scmp.eq.s32.totalorder %s139, 0
      %s142 = sadd.s32 %s141, 1
      %s143 = scalar_select %p140, %s141, %s142
      %p146 = pneg %p140
      %p147 = scmp.eq.s32.totalorder %s26, 17
      %p148 = por %p146, %p147
      %p149 = scmp.ne.s32.totalorder %s141, %s144
      %p150 = scmp.eq.s32.totalorder %s26, 0
      %p151 = por %p149, %p150
      %p152 = scmp.ne.s32.totalorder %s141, %s144
      %p153 = scmp.eq.s32.totalorder %s31, 17
      %p154 = por %p152, %p153
      %p155 = scmp.ne.s32.totalorder %s144, %s145
      %p156 = scmp.eq.s32.totalorder %s31, 0
      %p157 = por %p155, %p156
      %p158 = scmp.ne.s32.totalorder %s144, %s145
      %p159 = scmp.eq.s32.totalorder %s32, 17
      %p160 = por %p158, %p159
      %p162 = scmp.ne.s32.totalorder %s145, %s161
      %p163 = scmp.eq.s32.totalorder %s32, 0
      %p164 = por %p162, %p163
      %p165 = scmp.le.s32.totalorder 1, %s26
      %p166 = scmp.lt.s32.totalorder %s26, 19
      %p167 = pnand %p165, %p166
      %p168 = pneg %p167
      // Predicated region
      $region9: #{tpu_custom_call.1} parent=5 // pred_check
        _
      $region10: #{tpu_custom_call.1} parent=5 // pred_check_branch
        %170 = sbr.rel (%p167) target = $region12
      $region11: #{tpu_custom_call.1} parent=5 // pred_region
        %s171 = ssub.s32 %s26, 1
      $region12: #{tpu_custom_call.1} parent=5 // pred_fallthru
        _
      %p172 = scmp.lt.s32.totalorder %s26, 18
      // Predicated region
      $region13: #{tpu_custom_call.1} parent=5 // pred_check
        %p173 = pneg %p172
      $region14: #{tpu_custom_call.1} parent=5 // pred_check_branch
        %175 = sbr.rel (%p173) target = $region16
      $region15: #{tpu_custom_call.1} parent=5 // pred_region
        // Predicated region
        $region17: #{tpu_custom_call.1} parent=15 // pred_check
          %p176 = pneg %p89
        $region18: #{tpu_custom_call.1} parent=15 // pred_check_branch
          %178 = sbr.rel (%p176) target = $region20
        $region19: #{tpu_custom_call.1} parent=15 // pred_region
          %s179 = sand.u32 %s79, 1
          %s180 = scalar_lea.sflag [#allocation10], %s179
          %s181 = sand.u32 %s79, 1
          %s182 = smul.addr %s181, 8
          %s183 = scalar_lea.vmem [#allocation9], %s182
          %s184 = sld [smem:[#allocation7 + %s33]]
          %s185 = ssub.s32 %s184, 1
          %p186 = scmp.lt.s32.totalorder %s34, %s185
          %s187 = scalar_select %p186, %s34, %s185
          %p188 = scmp.lt.s32.totalorder %s34, %s184
          %s189 = sld [smem:[#allocation8 + %s33]]
          %s190 = ssub.s32 %s189, 1
          %p191 = scmp.lt.s32.totalorder %s35, %s190
          %s192 = scalar_select %p191, %s35, %s190
          %s193 = scalar_select %p188, %s192, %s190
          %s195 = ssub.s32 128, 128
          %196 = vsyncadd %s180, %s195
          %s197 = smul.addr %s187, 2
          %s198 = sadd.s32 %s193, %s197
          %s199 = smul.addr %s33, 6
          %s200 = sadd.s32 %s198, %s199
          %s201 = smul.addr %s200, 128
          %s202 = scalar_lea.hbm %s2, %s201
          %s204 = sshll.u32 %s183, 4
          %s205 = int_to_ptr.vmem [resolvable:$true] %s204
          %207 = dma.hbm_to_vmem [thread:$0]  %s202, 128, %s205, %s180
        $region20: #{tpu_custom_call.1} parent=15 // pred_fallthru
          _
        // Predicated region
        $region21: #{tpu_custom_call.1} parent=15 // pred_check
          %p208 = pneg %p125
        $region22: #{tpu_custom_call.1} parent=15 // pred_check_branch
          %210 = sbr.rel (%p208) target = $region24
        $region23: #{tpu_custom_call.1} parent=15 // pred_region
          %s211 = sld [smem:[#allocation7 + %s33]]
          %s212 = ssub.s32 %s211, 1
          %p213 = scmp.lt.s32.totalorder %s34, %s212
          %s214 = scalar_select %p213, %s34, %s212
          %p215 = scmp.lt.s32.totalorder %s33, 2
          %s216 = scalar_select %p215, %s33, 2
          %p217 = scmp.lt.s32.totalorder %s214, 2
          %s218 = scalar_select %p217, %s214, 2
          %s219 = smul.addr %s216, 3
          %s220 = sadd.s32 %s218, %s219
          %s221 = smul.addr %s220, 8
          %s222 = scalar_lea.vmem %s3, %s221
          %s223 = sld [smem:[#allocation7 + %s33]]
          %s224 = ssub.s32 %s223, 1
          %p225 = scmp.lt.s32.totalorder %s34, %s224
          %s226 = scalar_select %p225, %s34, %s224
        $region24: #{tpu_custom_call.1} parent=15 // pred_fallthru
          _
      $region16: #{tpu_custom_call.1} parent=5 // pred_fallthru
        _
      %p227 = scmp.le.s32.totalorder 1, %s26
      %p228 = scmp.lt.s32.totalorder %s26, 19
      %p229 = pnand %p227, %p228
      %p230 = pneg %p229
      // Predicated region
      $region25: #{tpu_custom_call.1} parent=5 // pred_check
        _
      $region26: #{tpu_custom_call.1} parent=5 // pred_check_branch
        %232 = sbr.rel (%p229) target = $region28
      $region27: #{tpu_custom_call.1} parent=5 // pred_region
        %s233 = ssub.s32 %s26, 1
        %s234 = sand.u32 %s82, 1
        %s235 = scalar_lea.sflag [#allocation10], %s234
        %s236 = sand.u32 %s82, 1
        %s237 = smul.addr %s236, 8
        %s238 = scalar_lea.vmem [#allocation9], %s237
        // Predicated region
        $region29: #{tpu_custom_call.1} parent=27 // pred_check
          %p239 = pneg %p95
        $region30: #{tpu_custom_call.1} parent=27 // pred_check_branch
          %241 = sbr.rel (%p239) target = $region32
        $region31: #{tpu_custom_call.1} parent=27 // pred_region
          %242 = dma.done %s235, 128
        $region32: #{tpu_custom_call.1} parent=27 // pred_fallthru
          _
        %s243 = sand.u32 %s82, 1
        %s244 = scalar_lea.sflag [#allocation10], %s243
        %s245 = sand.u32 %s82, 1
        %s246 = smul.addr %s245, 8
        %s247 = scalar_lea.vmem [#allocation9], %s246
        %p248 = pneg %p95
        %p249 = pneg %p92
        %s250 = sld [smem:[#allocation7 + %s36]]
        %s251 = ssub.s32 %s250, 1
        %p252 = scmp.lt.s32.totalorder %s37, %s251
        %s253 = scalar_select %p252, %s37, %s251
        %p254 = scmp.lt.s32.totalorder %s36, 2
        %s255 = scalar_select %p254, %s36, 2
        %p256 = scmp.lt.s32.totalorder %s253, 2
        %s257 = scalar_select %p256, %s253, 2
        %s258 = smul.addr %s255, 3
        %s259 = sadd.s32 %s257, %s258
        %s260 = smul.addr %s259, 8
        %s261 = scalar_lea.vmem %s3, %s260
        %p262 = pneg %p131
        %p263 = pneg %p128
        %p264 = pneg %p157
        %p265 = pneg %p154
        %s266 = sand.u32 %s144, 1
        %s267 = scalar_lea.sflag [#allocation11], %s266
        %s268 = sand.u32 %s144, 1
        %s269 = smul.addr %s268, 8
        %s270 = scalar_lea.vmem [#allocation12], %s269
        %s271 = sld [smem:[#allocation7 + %s36]]
        %s272 = ssub.s32 %s271, 1
        %p273 = scmp.lt.s32.totalorder %s37, %s272
        %s274 = scalar_select %p273, %s37, %s272
        %p275 = scmp.lt.s32.totalorder %s37, %s271
        %s276 = sld [smem:[#allocation8 + %s36]]
        %s277 = ssub.s32 %s276, 1
        %p278 = scmp.lt.s32.totalorder %s38, %s277
        %s279 = scalar_select %p278, %s38, %s277
        %s280 = scalar_select %p275, %s279, %s277
        %s281 = sld [smem:[#allocation7 + %s36]]
        %s282 = ssub.s32 %s281, 1
        %p283 = scmp.lt.s32.totalorder %s37, %s282
        %s284 = scalar_select %p283, %s37, %s282
        %p285 = scmp.lt.s32.totalorder %s36, 2
        %s286 = scalar_select %p285, %s36, 2
        %p287 = scmp.lt.s32.totalorder %s284, 2
        %s288 = scalar_select %p287, %s284, 2
        %s289 = smul.addr %s286, 3
        %s290 = sadd.s32 %s288, %s289
        %s291 = smul.addr %s290, 8
        %s292 = scalar_lea.vmem %s3, %s291
        %s293 = sld [smem:[#allocation7 + %s36]]
        %s294 = ssub.s32 %s293, 1
        %p295 = scmp.lt.s32.totalorder %s37, %s294
        %s296 = scalar_select %p295, %s37, %s294
        %s297 = sld [smem:[#allocation7 + %s36]]
        %p298 = scmp.lt.s32.totalorder %s37, %s297
        %s299 = sld [smem:[#allocation8 + %s36]]
        %p300 = scmp.lt.s32.totalorder %s38, %s299
        %p301 = pnand %p298, %p300
        %p302 = pneg %p301
        %p303 = scmp.eq.s32.totalorder %s37, 0
        %p304 = scmp.eq.s32.totalorder %s38, 0
        %p305 = pnand %p303, %p304
        %p306 = pneg %p305
        // Predicated region
        $region33: #{tpu_custom_call.1} parent=27 // pred_check
          _
        $region34: #{tpu_custom_call.1} parent=27 // pred_check_branch
          %308 = sbr.rel (%p305) target = $region36
        $region35: #{tpu_custom_call.1} parent=27 // pred_region
          %vm309 = vcmask 0
          %310 = vst.msk [vmem:[#allocation5] sm:$0x1] %vm309, 0.0
        $region36: #{tpu_custom_call.1} parent=27 // pred_fallthru
          _
        %p311 = pnand %p304, %p298
        %p312 = pneg %p311
        // Predicated region
        $region37: #{tpu_custom_call.1} parent=27 // pred_check
          _
        $region38: #{tpu_custom_call.1} parent=27 // pred_check_branch
          %314 = sbr.rel (%p311) target = $region40
        $region39: #{tpu_custom_call.1} parent=27 // pred_region
          %vm315 = vcmask 7168
          %316 = vst.msk [vmem:[#allocation2] sm:$0xff] %vm315, -1e+30
          %317 = vst.msk [vmem:[#allocation3] sm:$0xff] %vm315, 0.0
          %318 = vst.msk [vmem:[#allocation4] sm:$0xff] %vm315, 0.0
        $region40: #{tpu_custom_call.1} parent=27 // pred_fallthru
          _
        // Predicated region
        $region41: #{tpu_custom_call.1} parent=27 // pred_check
          _
        $region42: #{tpu_custom_call.1} parent=27 // pred_check_branch
          %320 = sbr.rel (%p301) target = $region44
        $region43: #{tpu_custom_call.1} parent=27 // pred_region
          %v321 = vld [vmem:[%s238] sm:$0xff]
          %v322 = vld [vmem:[%s292] sm:$0xff]
          %v323 = vld [vmem:[#allocation2] sm:$0xff]
          %324 = vmax.xlane.f32.xlu0 %v321
          %v325 = vpop.xlane.xlu0 %324
          %v326 = vmax.f32 %v323, %v325
          %328 = vset.pattern.permute.xlu0 0
          %329 = vperm.xlu0 %328, %v326
          %v330 = vpop.permute.xlu0 %329
          %v332 = vsub.f32 %v321, %v330
          %v333 = vmul.f32 %v332, 1.442695
          %v334 = vpow.pop %v333
          %v335 = vld [vmem:[#allocation3] sm:$0xff]
          %v336 = vsub.f32 %v323, %v326
          %v337 = vmul.f32 %v336, 1.442695
          %v338 = vpow.pop %v337
          %v339 = vmul.f32 %v335, %v338
          %340 = vadd.xlane.f32.xlu0 %v334
          %v341 = vpop.xlane.xlu0 %340
          %v342 = vadd.f32 %v339, %v341
          %vm343 = vcmask 7168
          %344 = vst.msk [vmem:[#allocation3] sm:$0xff] %vm343, %v342
          %345 = vst.msk [vmem:[#allocation2] sm:$0xff] %vm343, %v326
          %v346 = vlaneseq
          %v347 = vand.u32 %v346, 127
          %s348 = smul.u32 %s38, 128
          %v349 = vstv %s348
          %v350 = vadd.s32 %v347, %v349
          %v351 = vld [vmem:[#allocation4] sm:$0xff]
          %352 = vset.pattern.permute.xlu0 0
          %353 = vperm.xlu0 %352, %v322
          %v354 = vpop.permute.xlu0 %353
          %vm355 = vcmp.eq.s32.totalorder %v350, %v354
          %v356 = vsel %vm355, %v321, 0.0
          %357 = vadd.xlane.f32.xlu0 %v356
          %v358 = vpop.xlane.xlu0 %357
          %v359 = vadd.f32 %v351, %v358
          %360 = vst.msk [vmem:[#allocation4] sm:$0xff] %vm343, %v359
        $region44: #{tpu_custom_call.1} parent=27 // pred_fallthru
          _
        %p361 = scmp.eq.s32.totalorder %s38, 1
        %p362 = pnand %p361, %p298
        %p363 = pneg %p362
        // Predicated region
        $region45: #{tpu_custom_call.1} parent=27 // pred_check
          _
        $region46: #{tpu_custom_call.1} parent=27 // pred_check_branch
          %365 = sbr.rel (%p362) target = $region48
        $region47: #{tpu_custom_call.1} parent=27 // pred_region
          %v366 = vld [vmem:[%s292] sm:$0xff]
          %v367 = vld [vmem:[#allocation2] sm:$0xff]
          %v368 = vld [vmem:[#allocation3] sm:$0xff]
          %v369 = vlog2.pop %v368
          %v370 = vmul.f32 %v369, 0.6931472
          %v371 = vadd.f32 %v367, %v370
          %vm372 = vcmp.ge.s32.totalorder %v366, 0
          %v373 = vld [vmem:[#allocation4] sm:$0xff]
          %v374 = vsub.f32 %v371, %v373
          %v375 = vsel %vm372, %v374, 0.0
          %v376 = vld [vmem:[#allocation5] sm:$0x1]
          %vm377 = vcmask 7168
          %v378 = vsel %vm377, %v375, 0.0
          %v379 = vrot.slane %v378, 4
          %v380 = vadd.f32 %v378, %v379
          %v381 = vrot.slane %v380, 2
          %v382 = vadd.f32 %v380, %v381
          %v383 = vrot.slane %v382, 1
          %v384 = vadd.f32 %v382, %v383
          %v385 = vadd.f32 %v376, %v384
          %vm386 = vcmask 0
          %387 = vst.msk [vmem:[#allocation5] sm:$0x1] %vm386, %v385
        $region48: #{tpu_custom_call.1} parent=27 // pred_fallthru
          _
        %p388 = scmp.eq.s32.totalorder %s37, 2
        %p389 = pnand %p388, %p361
        %p390 = pneg %p389
        // Predicated region
        $region49: #{tpu_custom_call.1} parent=27 // pred_check
          _
        $region50: #{tpu_custom_call.1} parent=27 // pred_check_branch
          %392 = sbr.rel (%p389) target = $region52
        $region51: #{tpu_custom_call.1} parent=27 // pred_region
          %v393 = vld [vmem:[#allocation5] sm:$0x1]
          %v395 = vlaneseq
          %v396 = vshrl.u32 %v395, 7
          %v397 = vsub.s32 0, %v396
          %v398 = vrot.slane %v393, %v397
          %399 = vset.pattern.permute.xlu0 0
          %400 = vperm.xlu0 %399, %v398
          %v401 = vpop.permute.xlu0 %400
          %v403 = vadd.f32 %v401, 0.0
          %404 = vst [vmem:[%s270] sm:$0xff] %v403
        $region52: #{tpu_custom_call.1} parent=27 // pred_fallthru
          _
        %s405 = sand.u32 %s144, 1
        %s406 = scalar_lea.sflag [#allocation11], %s405
        %s407 = sand.u32 %s144, 1
        %s408 = smul.addr %s407, 8
        %s409 = scalar_lea.vmem [#allocation12], %s408
        // Predicated region
        $region53: #{tpu_custom_call.1} parent=27 // pred_check
          %p410 = pneg %p154
        $region54: #{tpu_custom_call.1} parent=27 // pred_check_branch
          %412 = sbr.rel (%p410) target = $region56
        $region55: #{tpu_custom_call.1} parent=27 // pred_region
          %s414 = ssub.s32 128, 128
          %415 = vsyncadd %s406, %s414
          %s416 = smul.addr %s36, 128
          %s417 = scalar_lea.hbm %s4, %s416
          %s419 = sshll.u32 %s409, 4
          %s420 = int_to_ptr.vmem [resolvable:$true] %s419
          %422 = dma.vmem_to_hbm [thread:$0]  %s420, 128, %s417, %s406
        $region56: #{tpu_custom_call.1} parent=27 // pred_fallthru
          _
      $region28: #{tpu_custom_call.1} parent=5 // pred_fallthru
        _
      %p423 = scmp.le.s32.totalorder 2, %s26
      // Predicated region
      $region57: #{tpu_custom_call.1} parent=5 // pred_check
        %p424 = pneg %p423
      $region58: #{tpu_custom_call.1} parent=5 // pred_check_branch
        %426 = sbr.rel (%p424) target = $region60
      $region59: #{tpu_custom_call.1} parent=5 // pred_region
        %s427 = ssub.s32 %s26, 2
        // Predicated region
        $region61: #{tpu_custom_call.1} parent=59 // pred_check
          %p428 = pneg %p160
        $region62: #{tpu_custom_call.1} parent=59 // pred_check_branch
          %430 = sbr.rel (%p428) target = $region64
        $region63: #{tpu_custom_call.1} parent=59 // pred_region
          %s431 = sand.u32 %s145, 1
          %s432 = scalar_lea.sflag [#allocation11], %s431
          %s433 = sand.u32 %s145, 1
          %s434 = smul.addr %s433, 8
          %s435 = scalar_lea.vmem [#allocation12], %s434
          %436 = dma.done %s432, 128
        $region64: #{tpu_custom_call.1} parent=59 // pred_fallthru
          _
      $region60: #{tpu_custom_call.1} parent=5 // pred_fallthru
        _
    $region6: #{tpu_custom_call.1} parent=1 // loop_footer
      %s30 = sadd.s32 1, %s26
    $region7: #{tpu_custom_call.1} parent=1 // loop_footer_branch
      %25 = sbr.rel target = $region3
    $region8: #{tpu_custom_call.1} parent=1 // loop_exit
      _
    %437 = vsyncpa [#allocation10], 1
    %s438 = scalar_lea.sflag [#allocation10], 1
    %439 = vsyncpa %s438, 1
    %440 = vsyncpa [#allocation11], 1
    %s441 = scalar_lea.sflag [#allocation11], 1
    %442 = vsyncpa %s441, 1

</llo_original>
